<compile_context>
chip_gen: v6e
topology: v6e:2x2x1
jax: 0.10.0
libtpu: 0.0.40
codegen_flags: <defaults>
</compile_context>

<pallas_src>
import functools

import jax
import jax.numpy as jnp
from jax import lax
from jax.experimental import pallas as pl
from jax.experimental.pallas import tpu as pltpu


def _cdiv(a, b):
    return (a + b - 1) // b


def _round_up(n, m):
    return _cdiv(n, m) * m


def _choose_tiling(batch, max_tile):
    """Adaptive lane-aligned batch tile; even >=2-step grid for big batches (v7x)."""
    max_tile = max(128, _round_up(max_tile, 128))
    b128 = _round_up(batch, 128)
    n = _cdiv(b128, max_tile)
    if batch > 2 * 128:
        # Keep an even number of >= 2 grid steps so the "parallel" batch axis
        # actually splits across both TensorCores on v7x (no-op on v5e/v6e).
        n = max(n, 2)
        if n % 2:
            n += 1
    tb = _round_up(_cdiv(batch, n), 128)
    b_pad = n * tb
    return tb, b_pad, n


def _make_kernel(dim_1, dim_2, hidden, fuse_hidden, precision, n_per_net):
    """Build the kernel for either the fully-fused or the layer-2/3-split path."""

    def _dot(a, b):
        # Precision pinned explicitly so numerics don't silently change with
        # JAX defaults / chip generation.
        return jnp.dot(a, b, preferred_element_type=jnp.float32,
                       precision=precision)

    def dense_pair(inp, ones, prms):
        """Fused (t, s) DenseNet pair on a (d, TB) input; returns (t, s)."""
        # Layer-1 bias folded into the matmul via an appended ones row.
        inp_aug = jnp.concatenate([inp, ones], axis=0)        # (d+1, TB)
        if fuse_hidden:
            w1b, w2, b2, w3, b3 = prms
            h = jnp.tanh(_dot(w1b[...], inp_aug))              # (2H, TB)
            h = jnp.tanh(_dot(w2[...], h) + b2[...])           # (2H, TB)
            ts = _dot(w3[...], h) + b3[...]                    # (2*out, TB)
            out = w3.shape[0] // 2
            return ts[:out, :], ts[out:, :]
        else:
            # 2*hidden exceeds one MXU tile: keep layers 2/3 per sub-network
            # (zero blocks would be real MACs), layer 1 stays row-stacked.
            w1b, tw2, tb2, sw2, sb2, tw3, tb3, sw3, sb3 = prms
            h = jnp.tanh(_dot(w1b[...], inp_aug))              # (2H, TB)
            ht, hs = h[:hidden, :], h[hidden:, :]
            ht = jnp.tanh(_dot(tw2[...], ht) + tb2[...])
            hs = jnp.tanh(_dot(sw2[...], hs) + sb2[...])
            t = _dot(tw3[...], ht) + tb3[...]
            s = _dot(sw3[...], hs) + sb3[...]
            return t, s

    def kernel(x_ref, *refs):
        params = refs[:2 * n_per_net]
        z_ref, ld_ref = refs[2 * n_per_net:]
        net1 = params[:n_per_net]
        net2 = params[n_per_net:]

        # In-kernel transpose (XLU, idle in this kernel): (TB, feat_pad) -> (feat_pad, TB).
        xt = x_ref[...].T
        tb = xt.shape[1]
        lower = xt[:dim_1, :]                                  # (dim_1, TB)
        upper = xt[dim_1:dim_1 + dim_2, :]                     # (dim_2, TB)
        ones = jnp.ones((1, tb), jnp.float32)

        t1, s1 = dense_pair(lower, ones, net1)
        upper_new = t1 + upper * jnp.exp(s1)

        t2, s2 = dense_pair(upper_new, ones, net2)
        lower_new = t2 + lower * jnp.exp(s2)

        # Single fused lane-dense output store (no wrapper concat pass).
        z_ref[...] = jnp.concatenate([lower_new, upper_new], axis=0)
        ld_ref[...] = (jnp.sum(s1, axis=0, keepdims=True)
                       + jnp.sum(s2, axis=0, keepdims=True))

    return kernel


def _pack_net(p_t, p_s, fuse_hidden):
    """Pack a (t, s) DenseNet pair sharing one input into fused kernel params.

    Inputs are PyTorch-layout: weights (in, out), biases (1, out). Outputs are
    transposed for batch-on-lanes: weights (out, in), biases (out, 1). Layer 1
    is row-stacked with its bias folded in as an extra input column; layers 2/3
    are block-diagonal only when `fuse_hidden` (2H fits one MXU tile).
    """
    tw1, tb1, tw2, tb2, tw3, tb3 = p_t
    sw1, sb1, sw2, sb2, sw3, sb3 = p_s

    w1 = jnp.concatenate([tw1.T, sw1.T], axis=0)                           # (2H, in)
    b1 = jnp.concatenate([tb1.reshape(-1, 1), sb1.reshape(-1, 1)], axis=0)  # (2H, 1)
    w1b = jnp.concatenate([w1, b1], axis=1)                                # (2H, in+1)

    if fuse_hidden:
        hid = tw2.shape[0]
        out = tw3.shape[1]
        zh = jnp.zeros((hid, hid), tw2.dtype)
        zo = jnp.zeros((out, hid), tw3.dtype)
        w2 = jnp.block([[tw2.T, zh], [zh, sw2.T]])                         # (2H, 2H)
        b2 = jnp.concatenate([tb2.reshape(-1, 1), sb2.reshape(-1, 1)], 0)
        w3 = jnp.block([[tw3.T, zo], [zo, sw3.T]])                         # (2out, 2H)
        b3 = jnp.concatenate([tb3.reshape(-1, 1), sb3.reshape(-1, 1)], 0)
        return [w1b, w2, b2, w3, b3]

    return [w1b,
            tw2.T, tb2.reshape(-1, 1), sw2.T, sb2.reshape(-1, 1),
            tw3.T, tb3.reshape(-1, 1), sw3.T, sb3.reshape(-1, 1)]


def realnvp_forward(x, params, dim_1, dim_2, *,
                    max_batch_tile=4096,
                    mxu_tile=128,
                    matmul_precision=lax.Precision.DEFAULT):
    """params: dict with keys 't1','s1','t2','s2', each (w1,b1,w2,b2,w3,b3) with
    PyTorch-style (in, out) weights and (1, out) biases."""
    batch = x.shape[0]
    feat = dim_1 + dim_2
    hidden = params["t1"][2].shape[0]
    # Block-diagonal 2/3-layer fusion only while 2H fits one MXU tile
    # (128 is the conservative v5e limit; pass mxu_tile=256 on v6e/v7x).
    fuse_hidden = (2 * hidden) <= mxu_tile
    n_per_net = 5 if fuse_hidden else 9

    net1 = _pack_net(params["t1"], params["s1"], fuse_hidden)
    net2 = _pack_net(params["t2"], params["s2"], fuse_hidden)
    flat = net1 + net2

    tb, b_pad, n_tiles = _choose_tiling(batch, max_batch_tile)
    feat_pad = _round_up(feat, 8)

    # Only a zero-pad of x (no transpose / no concat materialized in HBM).
    x_pad = jnp.pad(x.astype(jnp.float32),
                    ((0, b_pad - batch), (0, feat_pad - feat)))

    # Advisory cost estimate for XLA's scheduler.
    h2 = 2 * hidden
    if fuse_hidden:
        per_col = (2 * (h2 * (dim_1 + 1) + h2 * h2 + 2 * dim_2 * h2)
                   + 2 * (h2 * (dim_2 + 1) + h2 * h2 + 2 * dim_1 * h2))
    else:
        per_col = (2 * (h2 * (dim_1 + 1) + 2 * hidden * hidden + 2 * dim_2 * hidden)
                   + 2 * (h2 * (dim_2 + 1) + 2 * hidden * hidden + 2 * dim_1 * hidden))
    flops = per_col * b_pad
    transcendentals = b_pad * (4 * h2 + 2 * feat)
    param_bytes = sum(int(p.size) for p in flat) * 4
    bytes_accessed = 4 * b_pad * (feat_pad + feat + 1) + param_bytes

    kernel = _make_kernel(dim_1, dim_2, hidden, fuse_hidden,
                          matmul_precision, n_per_net)

    # Weights stay VMEM-resident across all grid steps (constant block index).
    weight_specs = [pl.BlockSpec(p.shape, lambda i: (0, 0)) for p in flat]

    z_t, ld_t = pl.pallas_call(
        kernel,
        out_shape=(
            jax.ShapeDtypeStruct((feat, b_pad), jnp.float32),
            jax.ShapeDtypeStruct((1, b_pad), jnp.float32),
        ),
        grid=(n_tiles,),
        in_specs=[pl.BlockSpec((tb, feat_pad), lambda i: (i, 0))] + weight_specs,
        out_specs=(
            pl.BlockSpec((feat, tb), lambda i: (0, i)),
            pl.BlockSpec((1, tb), lambda i: (0, i)),
        ),
        compiler_params=pltpu.CompilerParams(
            dimension_semantics=("parallel",)),
        cost_estimate=pl.CostEstimate(flops=flops,
                                      transcendentals=transcendentals,
                                      bytes_accessed=bytes_accessed),
    )(x_pad, *flat)

    z = z_t.T[:batch]                 # single wrapper transpose (only post-proc pass)
    log_det = ld_t[0, :batch]
    return z, log_det


# ---------------- pure-JAX reference of the PyTorch forward ----------------

def _init_dense_params(key, in_dim, out_dim, hidden_dim):
    """Weights stored as (in, out); biases as (1, out)."""
    k1, k2, k3, k4, k5, k6 = jax.random.split(key, 6)
    scale = 0.1
    w1 = scale * jax.random.normal(k1, (in_dim, hidden_dim), jnp.float32)
    b1 = scale * jax.random.normal(k2, (1, hidden_dim), jnp.float32)
    w2 = scale * jax.random.normal(k3, (hidden_dim, hidden_dim), jnp.float32)
    b2 = scale * jax.random.normal(k4, (1, hidden_dim), jnp.float32)
    w3 = scale * jax.random.normal(k5, (hidden_dim, out_dim), jnp.float32)
    b3 = scale * jax.random.normal(k6, (1, out_dim), jnp.float32)
    return (w1, b1, w2, b2, w3, b3)


def _dense_ref(x, p):
    w1, b1, w2, b2, w3, b3 = p
    h = jnp.tanh(x @ w1 + b1)
    h = jnp.tanh(h @ w2 + b2)
    return h @ w3 + b3


def _realnvp_ref(x, params, dim_1, dim_2):
    lower, upper = x[:, :dim_1], x[:, dim_1:]
    t1 = _dense_ref(lower, params["t1"])
    s1 = _dense_ref(lower, params["s1"])
    upper = t1 + upper * jnp.exp(s1)
    t2 = _dense_ref(upper, params["t2"])
    s2 = _dense_ref(upper, params["s2"])
    lower = t2 + lower * jnp.exp(s2)
    z = jnp.concatenate([lower, upper], axis=-1)
    log_det = jnp.sum(s1, axis=-1) + jnp.sum(s2, axis=-1)
    return z, log_det


def _run_case(seed, batch, dim_1, dim_2, hidden):
    root = jax.random.PRNGKey(seed)
    kx, kt1, ks1, kt2, ks2 = jax.random.split(root, 5)
    x = jax.random.normal(kx, (batch, dim_1 + dim_2), jnp.float32)
    params = {
        "t1": _init_dense_params(kt1, dim_1, dim_2, hidden),
        "s1": _init_dense_params(ks1, dim_1, dim_2, hidden),
        "t2": _init_dense_params(kt2, dim_2, dim_1, hidden),
        "s2": _init_dense_params(ks2, dim_2, dim_1, hidden),
    }

    z, log_det = realnvp_forward(x, params, dim_1, dim_2)
    jax.block_until_ready((z, log_det))

    z_ref, ld_ref = _realnvp_ref(x, params, dim_1, dim_2)
    assert z.shape == (batch, dim_1 + dim_2)
    assert log_det.shape == (batch,)
    assert jnp.allclose(z, z_ref, atol=1e-4, rtol=1e-4)
    assert jnp.allclose(log_det, ld_ref, atol=1e-4, rtol=1e-4)


if __name__ == "__main__":
    # Small primary case (matches the original module scale): 1-step grid, fused nets.
    _run_case(seed=0, batch=8, dim_1=4, dim_2=4, hidden=32)
    # Multi-tile case: 2-step even grid (v7x both-TC path), batch padding, uneven split.
    _run_case(seed=0, batch=1030, dim_1=3, dim_2=5, hidden=64)
    # 2*hidden > 128: exercises the MXU-tile-guarded split layer-2/3 path.
    _run_case(seed=1, batch=300, dim_1=4, dim_2=4, hidden=96)

    print("KERNEL_OK")
</pallas_src>

<mosaic_0001>
module attributes {stable_mosaic.version = 11 : i64} {
  func.func @kernel(%arg0: i32, %arg1: memref<128x8xf32, #tpu.memory_space<vmem>>, %arg2: memref<64x5xf32, #tpu.memory_space<vmem>>, %arg3: memref<64x64xf32, #tpu.memory_space<vmem>>, %arg4: memref<64x1xf32, #tpu.memory_space<vmem>>, %arg5: memref<8x64xf32, #tpu.memory_space<vmem>>, %arg6: memref<8x1xf32, #tpu.memory_space<vmem>>, %arg7: memref<64x5xf32, #tpu.memory_space<vmem>>, %arg8: memref<64x64xf32, #tpu.memory_space<vmem>>, %arg9: memref<64x1xf32, #tpu.memory_space<vmem>>, %arg10: memref<8x64xf32, #tpu.memory_space<vmem>>, %arg11: memref<8x1xf32, #tpu.memory_space<vmem>>, %arg12: memref<8x128xf32, #tpu.memory_space<vmem>>, %arg13: memref<1x128xf32, #tpu.memory_space<vmem>>) attributes {dimension_semantics = [#tpu.dimension_semantics<parallel>], iteration_bounds = array<i64: 1>, scalar_prefetch = 0 : i64, scratch_operands = 0 : i64, tpu.core_type = #tpu.core_type<tc>, window_params = [{transform_indices = @transform_0, window_bounds = array<i64: 128, 8>}, {pipeline_mode = #tpu.pipeline_mode<synchronous>, transform_indices = @transform_1, window_bounds = array<i64: 64, 5>}, {pipeline_mode = #tpu.pipeline_mode<synchronous>, transform_indices = @transform_2, window_bounds = array<i64: 64, 64>}, {pipeline_mode = #tpu.pipeline_mode<synchronous>, transform_indices = @transform_3, window_bounds = array<i64: 64, 1>}, {pipeline_mode = #tpu.pipeline_mode<synchronous>, transform_indices = @transform_4, window_bounds = array<i64: 8, 64>}, {pipeline_mode = #tpu.pipeline_mode<synchronous>, transform_indices = @transform_5, window_bounds = array<i64: 8, 1>}, {pipeline_mode = #tpu.pipeline_mode<synchronous>, transform_indices = @transform_6, window_bounds = array<i64: 64, 5>}, {pipeline_mode = #tpu.pipeline_mode<synchronous>, transform_indices = @transform_7, window_bounds = array<i64: 64, 64>}, {pipeline_mode = #tpu.pipeline_mode<synchronous>, transform_indices = @transform_8, window_bounds = array<i64: 64, 1>}, {pipeline_mode = #tpu.pipeline_mode<synchronous>, transform_indices = @transform_9, window_bounds = array<i64: 8, 64>}, {pipeline_mode = #tpu.pipeline_mode<synchronous>, transform_indices = @transform_10, window_bounds = array<i64: 8, 1>}, {transform_indices = @transform_11, window_bounds = array<i64: 8, 128>}, {transform_indices = @transform_12, window_bounds = array<i64: 1, 128>}]} {
    %c0 = arith.constant 0 : index
    %c0_0 = arith.constant 0 : index
    %0 = vector.load %arg1[%c0, %c0_0] : memref<128x8xf32, #tpu.memory_space<vmem>>, vector<128x8xf32>
    %1 = tpu.transpose %0, [1, 0] : vector<128x8xf32> -> vector<8x128xf32>
    %2 = vector.extract_strided_slice %1 {offsets = [0, 0], sizes = [4, 128], strides = [1, 1]} : vector<8x128xf32> to vector<4x128xf32>
    %3 = vector.extract_strided_slice %1 {offsets = [4, 0], sizes = [4, 128], strides = [1, 1]} : vector<8x128xf32> to vector<4x128xf32>
    %cst = arith.constant 1.000000e+00 : f32
    %4 = vector.broadcast %cst : f32 to vector<1x128xf32>
    %5 = tpu.concatenate %2, %4 in 0 : vector<4x128xf32>, vector<1x128xf32> -> vector<5x128xf32>
    %c0_1 = arith.constant 0 : index
    %c0_2 = arith.constant 0 : index
    %6 = vector.load %arg2[%c0_1, %c0_2] : memref<64x5xf32, #tpu.memory_space<vmem>>, vector<64x5xf32>
    %cst_3 = arith.constant dense<0.000000e+00> : vector<64x128xf32>
    %7 = tpu.matmul %6, %5, %cst_3 {dimension_numbers = #tpu.dot_dimension_numbers<[1], [0], [0], [1], [0, 0, 1, 1], [], []>} : vector<64x5xf32>, vector<5x128xf32>, vector<64x128xf32> -> vector<64x128xf32>
    %8 = math.tanh %7 : vector<64x128xf32>
    %c0_4 = arith.constant 0 : index
    %c0_5 = arith.constant 0 : index
    %9 = vector.load %arg3[%c0_4, %c0_5] : memref<64x64xf32, #tpu.memory_space<vmem>>, vector<64x64xf32>
    %cst_6 = arith.constant dense<0.000000e+00> : vector<64x128xf32>
    %10 = tpu.matmul %9, %8, %cst_6 {dimension_numbers = #tpu.dot_dimension_numbers<[1], [0], [0], [1], [0, 0, 1, 1], [], []>} : vector<64x64xf32>, vector<64x128xf32>, vector<64x128xf32> -> vector<64x128xf32>
    %c0_7 = arith.constant 0 : index
    %c0_8 = arith.constant 0 : index
    %11 = vector.load %arg4[%c0_7, %c0_8] : memref<64x1xf32, #tpu.memory_space<vmem>>, vector<64x1xf32>
    %12 = vector.broadcast %11 : vector<64x1xf32> to vector<64x128xf32>
    %13 = arith.addf %10, %12 : vector<64x128xf32>
    %14 = math.tanh %13 : vector<64x128xf32>
    %c0_9 = arith.constant 0 : index
    %c0_10 = arith.constant 0 : index
    %15 = vector.load %arg5[%c0_9, %c0_10] : memref<8x64xf32, #tpu.memory_space<vmem>>, vector<8x64xf32>
    %cst_11 = arith.constant dense<0.000000e+00> : vector<8x128xf32>
    %16 = tpu.matmul %15, %14, %cst_11 {dimension_numbers = #tpu.dot_dimension_numbers<[1], [0], [0], [1], [0, 0, 1, 1], [], []>} : vector<8x64xf32>, vector<64x128xf32>, vector<8x128xf32> -> vector<8x128xf32>
    %c0_12 = arith.constant 0 : index
    %c0_13 = arith.constant 0 : index
    %17 = vector.load %arg6[%c0_12, %c0_13] : memref<8x1xf32, #tpu.memory_space<vmem>>, vector<8x1xf32>
    %18 = vector.broadcast %17 : vector<8x1xf32> to vector<8x128xf32>
    %19 = arith.addf %16, %18 : vector<8x128xf32>
    %20 = vector.extract_strided_slice %19 {offsets = [0, 0], sizes = [4, 128], strides = [1, 1]} : vector<8x128xf32> to vector<4x128xf32>
    %21 = vector.extract_strided_slice %19 {offsets = [4, 0], sizes = [4, 128], strides = [1, 1]} : vector<8x128xf32> to vector<4x128xf32>
    %22 = math.exp %21 : vector<4x128xf32>
    %23 = arith.mulf %3, %22 : vector<4x128xf32>
    %24 = arith.addf %20, %23 : vector<4x128xf32>
    %25 = tpu.concatenate %24, %4 in 0 : vector<4x128xf32>, vector<1x128xf32> -> vector<5x128xf32>
    %c0_14 = arith.constant 0 : index
    %c0_15 = arith.constant 0 : index
    %26 = vector.load %arg7[%c0_14, %c0_15] : memref<64x5xf32, #tpu.memory_space<vmem>>, vector<64x5xf32>
    %cst_16 = arith.constant dense<0.000000e+00> : vector<64x128xf32>
    %27 = tpu.matmul %26, %25, %cst_16 {dimension_numbers = #tpu.dot_dimension_numbers<[1], [0], [0], [1], [0, 0, 1, 1], [], []>} : vector<64x5xf32>, vector<5x128xf32>, vector<64x128xf32> -> vector<64x128xf32>
    %28 = math.tanh %27 : vector<64x128xf32>
    %c0_17 = arith.constant 0 : index
    %c0_18 = arith.constant 0 : index
    %29 = vector.load %arg8[%c0_17, %c0_18] : memref<64x64xf32, #tpu.memory_space<vmem>>, vector<64x64xf32>
    %cst_19 = arith.constant dense<0.000000e+00> : vector<64x128xf32>
    %30 = tpu.matmul %29, %28, %cst_19 {dimension_numbers = #tpu.dot_dimension_numbers<[1], [0], [0], [1], [0, 0, 1, 1], [], []>} : vector<64x64xf32>, vector<64x128xf32>, vector<64x128xf32> -> vector<64x128xf32>
    %c0_20 = arith.constant 0 : index
    %c0_21 = arith.constant 0 : index
    %31 = vector.load %arg9[%c0_20, %c0_21] : memref<64x1xf32, #tpu.memory_space<vmem>>, vector<64x1xf32>
    %32 = vector.broadcast %31 : vector<64x1xf32> to vector<64x128xf32>
    %33 = arith.addf %30, %32 : vector<64x128xf32>
    %34 = math.tanh %33 : vector<64x128xf32>
    %c0_22 = arith.constant 0 : index
    %c0_23 = arith.constant 0 : index
    %35 = vector.load %arg10[%c0_22, %c0_23] : memref<8x64xf32, #tpu.memory_space<vmem>>, vector<8x64xf32>
    %cst_24 = arith.constant dense<0.000000e+00> : vector<8x128xf32>
    %36 = tpu.matmul %35, %34, %cst_24 {dimension_numbers = #tpu.dot_dimension_numbers<[1], [0], [0], [1], [0, 0, 1, 1], [], []>} : vector<8x64xf32>, vector<64x128xf32>, vector<8x128xf32> -> vector<8x128xf32>
    %c0_25 = arith.constant 0 : index
    %c0_26 = arith.constant 0 : index
    %37 = vector.load %arg11[%c0_25, %c0_26] : memref<8x1xf32, #tpu.memory_space<vmem>>, vector<8x1xf32>
    %38 = vector.broadcast %37 : vector<8x1xf32> to vector<8x128xf32>
    %39 = arith.addf %36, %38 : vector<8x128xf32>
    %40 = vector.extract_strided_slice %39 {offsets = [0, 0], sizes = [4, 128], strides = [1, 1]} : vector<8x128xf32> to vector<4x128xf32>
    %41 = vector.extract_strided_slice %39 {offsets = [4, 0], sizes = [4, 128], strides = [1, 1]} : vector<8x128xf32> to vector<4x128xf32>
    %42 = math.exp %41 : vector<4x128xf32>
    %43 = arith.mulf %2, %42 : vector<4x128xf32>
    %44 = arith.addf %40, %43 : vector<4x128xf32>
    %45 = tpu.concatenate %44, %24 in 0 : vector<4x128xf32>, vector<4x128xf32> -> vector<8x128xf32>
    %c0_27 = arith.constant 0 : index
    %c0_28 = arith.constant 0 : index
    %46 = vector.load %arg12[%c0_27, %c0_28] : memref<8x128xf32, #tpu.memory_space<vmem>>, vector<8x128xf32>
    tpu.vector_store %arg12[%c0_27, %c0_28], %45 {strides = array<i32>} : memref<8x128xf32, #tpu.memory_space<vmem>>, vector<8x128xf32>,
    %cst_29 = arith.constant dense<0.000000e+00> : vector<128xf32>
    %47 = vector.multi_reduction <add>, %21, %cst_29 [0] : vector<4x128xf32> to vector<128xf32>
    %48 = vector.shape_cast %47 : vector<128xf32> to vector<1x128xf32>
    %cst_30 = arith.constant dense<0.000000e+00> : vector<128xf32>
    %49 = vector.multi_reduction <add>, %41, %cst_30 [0] : vector<4x128xf32> to vector<128xf32>
    %50 = vector.shape_cast %49 : vector<128xf32> to vector<1x128xf32>
    %51 = arith.addf %48, %50 : vector<1x128xf32>
    %c0_31 = arith.constant 0 : index
    %c0_32 = arith.constant 0 : index
    %52 = vector.load %arg13[%c0_31, %c0_32] : memref<1x128xf32, #tpu.memory_space<vmem>>, vector<1x128xf32>
    tpu.vector_store %arg13[%c0_31, %c0_32], %51 {strides = array<i32>} : memref<1x128xf32, #tpu.memory_space<vmem>>, vector<1x128xf32>,
    return
  }
  func.func @transform_0(%arg0: i32) -> (i32, i32) {
    %c0_i32 = arith.constant 0 : i32
    %c0_i32_0 = arith.constant 0 : i32
    return %arg0, %c0_i32 : i32, i32
  }
  func.func @transform_1(%arg0: i32) -> (i32, i32) {
    %c0_i32 = arith.constant 0 : i32
    %c0_i32_0 = arith.constant 0 : i32
    %c0_i32_1 = arith.constant 0 : i32
    return %c0_i32, %c0_i32_0 : i32, i32
  }
  func.func @transform_2(%arg0: i32) -> (i32, i32) {
    %c0_i32 = arith.constant 0 : i32
    %c0_i32_0 = arith.constant 0 : i32
    %c0_i32_1 = arith.constant 0 : i32
    return %c0_i32, %c0_i32_0 : i32, i32
  }
  func.func @transform_3(%arg0: i32) -> (i32, i32) {
    %c0_i32 = arith.constant 0 : i32
    %c0_i32_0 = arith.constant 0 : i32
    %c0_i32_1 = arith.constant 0 : i32
    return %c0_i32, %c0_i32_0 : i32, i32
  }
  func.func @transform_4(%arg0: i32) -> (i32, i32) {
    %c0_i32 = arith.constant 0 : i32
    %c0_i32_0 = arith.constant 0 : i32
    %c0_i32_1 = arith.constant 0 : i32
    return %c0_i32, %c0_i32_0 : i32, i32
  }
  func.func @transform_5(%arg0: i32) -> (i32, i32) {
    %c0_i32 = arith.constant 0 : i32
    %c0_i32_0 = arith.constant 0 : i32
    %c0_i32_1 = arith.constant 0 : i32
    return %c0_i32, %c0_i32_0 : i32, i32
  }
  func.func @transform_6(%arg0: i32) -> (i32, i32) {
    %c0_i32 = arith.constant 0 : i32
    %c0_i32_0 = arith.constant 0 : i32
    %c0_i32_1 = arith.constant 0 : i32
    return %c0_i32, %c0_i32_0 : i32, i32
  }
  func.func @transform_7(%arg0: i32) -> (i32, i32) {
    %c0_i32 = arith.constant 0 : i32
    %c0_i32_0 = arith.constant 0 : i32
    %c0_i32_1 = arith.constant 0 : i32
    return %c0_i32, %c0_i32_0 : i32, i32
  }
  func.func @transform_8(%arg0: i32) -> (i32, i32) {
    %c0_i32 = arith.constant 0 : i32
    %c0_i32_0 = arith.constant 0 : i32
    %c0_i32_1 = arith.constant 0 : i32
    return %c0_i32, %c0_i32_0 : i32, i32
  }
  func.func @transform_9(%arg0: i32) -> (i32, i32) {
    %c0_i32 = arith.constant 0 : i32
    %c0_i32_0 = arith.constant 0 : i32
    %c0_i32_1 = arith.constant 0 : i32
    return %c0_i32, %c0_i32_0 : i32, i32
  }
  func.func @transform_10(%arg0: i32) -> (i32, i32) {
    %c0_i32 = arith.constant 0 : i32
    %c0_i32_0 = arith.constant 0 : i32
    %c0_i32_1 = arith.constant 0 : i32
    return %c0_i32, %c0_i32_0 : i32, i32
  }
  func.func @transform_11(%arg0: i32) -> (i32, i32) {
    %c0_i32 = arith.constant 0 : i32
    %c0_i32_0 = arith.constant 0 : i32
    return %c0_i32, %arg0 : i32, i32
  }
  func.func @transform_12(%arg0: i32) -> (i32, i32) {
    %c0_i32 = arith.constant 0 : i32
    %c0_i32_0 = arith.constant 0 : i32
    return %c0_i32, %arg0 : i32, i32
  }
}

</mosaic_0001>

<llo_original>
// kernel: tpu_custom_call.1
$region0: #{tpu_custom_call.1}
  #allocation0 [shape = 'u32[]', space=smem, size = 0x4, offset = 0x4, fixed_abs, tag = 'smem constant byte address 0x4 - core index']
  #allocation1 [shape = 'u32[144,128]{1,0:T(1,128)}', space=vmem, size = 0x12000, scoped, tag = 'internal scratch']
  %s0 = inlined_call_operand.vmem [shape: f32[128,8], index: 0, kind: input, shape index: {}]
  %s1 = inlined_call_operand.vmem [shape: f32[64,5], index: 1, kind: input, shape index: {}]
  %s2 = inlined_call_operand.vmem [shape: f32[64,64], index: 2, kind: input, shape index: {}]
  %s3 = inlined_call_operand.vmem [shape: f32[64,1], index: 3, kind: input, shape index: {}]
  %s4 = inlined_call_operand.vmem [shape: f32[8,64], index: 4, kind: input, shape index: {}]
  %s5 = inlined_call_operand.vmem [shape: f32[8,1], index: 5, kind: input, shape index: {}]
  %s6 = inlined_call_operand.vmem [shape: f32[64,5], index: 6, kind: input, shape index: {}]
  %s7 = inlined_call_operand.vmem [shape: f32[64,64], index: 7, kind: input, shape index: {}]
  %s8 = inlined_call_operand.vmem [shape: f32[64,1], index: 8, kind: input, shape index: {}]
  %s9 = inlined_call_operand.vmem [shape: f32[8,64], index: 9, kind: input, shape index: {}]
  %s10 = inlined_call_operand.vmem [shape: f32[8,1], index: 10, kind: input, shape index: {}]
  %s11 = inlined_call_operand.hbm [shape: f32[8,128], index: 11, kind: output, shape index: {0}]
  %s12 = inlined_call_operand.hbm [shape: f32[1,128], index: 12, kind: output, shape index: {1}]
  %13 = xla_tuple %s11, %s12
  %s14 = sld [smem:[#allocation0]]
  $region62: #{tpu_custom_call.1} parent=0
    _
  %s16 = ssub.s32 1, %s14
  %s17 = scalar_select 0, %s16, %s14
  $region1: #{tpu_custom_call.1} parent=0
    #allocation2 [shape = 'u8[4096]{0}', space=vmem, size = 0x1000, scoped, tag = 'output window, operand 0, single buffered']
    #allocation3 [shape = 's32[1]{0}', space=sflag, size = 0x4, scoped, tag = 'scoped memory for tpu_custom_call.1']
    #allocation4 [shape = 'u8[512]{0}', space=vmem, size = 0x400, scoped, tag = 'output window, operand 1, single buffered']
    #allocation5 [shape = 's32[1]{0}', space=sflag, size = 0x4, scoped, tag = 'scoped memory for tpu_custom_call.1']
    %18 = vsyncpa [#allocation3], 0
    %19 = vsyncpa [#allocation5], 0
    // Predicated region
    $region2: #{tpu_custom_call.1} parent=1 // pred_check
      _
    $region3: #{tpu_custom_call.1} parent=1 // pred_check_branch
      %21 = sbr.rel (0) target = $region5
    $region4: #{tpu_custom_call.1} parent=1 // pred_region
      _
    $region5: #{tpu_custom_call.1} parent=1 // pred_fallthru
      _
    // Predicated region
    $region6: #{tpu_custom_call.1} parent=1 // pred_check
      _
    $region7: #{tpu_custom_call.1} parent=1 // pred_check_branch
      %23 = sbr.rel (0) target = $region9
    $region8: #{tpu_custom_call.1} parent=1 // pred_region
      _
    $region9: #{tpu_custom_call.1} parent=1 // pred_fallthru
      _
    // Predicated region
    $region10: #{tpu_custom_call.1} parent=1 // pred_check
      _
    $region11: #{tpu_custom_call.1} parent=1 // pred_check_branch
      %25 = sbr.rel (0) target = $region13
    $region12: #{tpu_custom_call.1} parent=1 // pred_region
      _
    $region13: #{tpu_custom_call.1} parent=1 // pred_fallthru
      _
    // Predicated region
    $region14: #{tpu_custom_call.1} parent=1 // pred_check
      _
    $region15: #{tpu_custom_call.1} parent=1 // pred_check_branch
      %27 = sbr.rel (0) target = $region17
    $region16: #{tpu_custom_call.1} parent=1 // pred_region
      _
    $region17: #{tpu_custom_call.1} parent=1 // pred_fallthru
      _
    // Predicated region
    $region18: #{tpu_custom_call.1} parent=1 // pred_check
      _
    $region19: #{tpu_custom_call.1} parent=1 // pred_check_branch
      %29 = sbr.rel (0) target = $region21
    $region20: #{tpu_custom_call.1} parent=1 // pred_region
      _
    $region21: #{tpu_custom_call.1} parent=1 // pred_fallthru
      _
    // Predicated region
    $region22: #{tpu_custom_call.1} parent=1 // pred_check
      _
    $region23: #{tpu_custom_call.1} parent=1 // pred_check_branch
      %31 = sbr.rel (0) target = $region25
    $region24: #{tpu_custom_call.1} parent=1 // pred_region
      _
    $region25: #{tpu_custom_call.1} parent=1 // pred_fallthru
      _
    // Predicated region
    $region26: #{tpu_custom_call.1} parent=1 // pred_check
      _
    $region27: #{tpu_custom_call.1} parent=1 // pred_check_branch
      %33 = sbr.rel (0) target = $region29
    $region28: #{tpu_custom_call.1} parent=1 // pred_region
      _
    $region29: #{tpu_custom_call.1} parent=1 // pred_fallthru
      _
    // Predicated region
    $region30: #{tpu_custom_call.1} parent=1 // pred_check
      _
    $region31: #{tpu_custom_call.1} parent=1 // pred_check_branch
      %35 = sbr.rel (0) target = $region33
    $region32: #{tpu_custom_call.1} parent=1 // pred_region
      _
    $region33: #{tpu_custom_call.1} parent=1 // pred_fallthru
      _
    // Predicated region
    $region34: #{tpu_custom_call.1} parent=1 // pred_check
      _
    $region35: #{tpu_custom_call.1} parent=1 // pred_check_branch
      %37 = sbr.rel (0) target = $region37
    $region36: #{tpu_custom_call.1} parent=1 // pred_region
      _
    $region37: #{tpu_custom_call.1} parent=1 // pred_fallthru
      _
    // Predicated region
    $region38: #{tpu_custom_call.1} parent=1 // pred_check
      _
    $region39: #{tpu_custom_call.1} parent=1 // pred_check_branch
      %39 = sbr.rel (0) target = $region41
    $region40: #{tpu_custom_call.1} parent=1 // pred_region
      _
    $region41: #{tpu_custom_call.1} parent=1 // pred_fallthru
      _
    // Predicated region
    $region42: #{tpu_custom_call.1} parent=1 // pred_check
      _
    $region43: #{tpu_custom_call.1} parent=1 // pred_check_branch
      %41 = sbr.rel (0) target = $region45
    $region44: #{tpu_custom_call.1} parent=1 // pred_region
      _
    $region45: #{tpu_custom_call.1} parent=1 // pred_fallthru
      _
    %v42 = vld [vmem:[%s0] sm:$0xff]
    %v43 = vld [vmem:[%s0 + $0x8] sm:$0xff]
    %v44 = vld [vmem:[%s0 + $0x10] sm:$0xff]
    %v45 = vld [vmem:[%s0 + $0x18] sm:$0xff]
    %v46 = vld [vmem:[%s0 + $0x20] sm:$0xff]
    %v47 = vld [vmem:[%s0 + $0x28] sm:$0xff]
    %v48 = vld [vmem:[%s0 + $0x30] sm:$0xff]
    %v49 = vld [vmem:[%s0 + $0x38] sm:$0xff]
    %v50 = vld [vmem:[%s0 + $0x40] sm:$0xff]
    %v51 = vld [vmem:[%s0 + $0x48] sm:$0xff]
    %v52 = vld [vmem:[%s0 + $0x50] sm:$0xff]
    %v53 = vld [vmem:[%s0 + $0x58] sm:$0xff]
    %v54 = vld [vmem:[%s0 + $0x60] sm:$0xff]
    %v55 = vld [vmem:[%s0 + $0x68] sm:$0xff]
    %v56 = vld [vmem:[%s0 + $0x70] sm:$0xff]
    %v57 = vld [vmem:[%s0 + $0x78] sm:$0xff]
    %58 = vxpose.xlu0.b32.start [1/16] %v42, 128
    %59 = vxpose.xlu0.b32.cont [2/16] %v43, 128
    %60 = vxpose.xlu0.b32.cont [3/16] %v44, 128
    %61 = vxpose.xlu0.b32.cont [4/16] %v45, 128
    %62 = vxpose.xlu0.b32.cont [5/16] %v46, 128
    %63 = vxpose.xlu0.b32.cont [6/16] %v47, 128
    %64 = vxpose.xlu0.b32.cont [7/16] %v48, 128
    %65 = vxpose.xlu0.b32.cont [8/16] %v49, 128
    %66 = vxpose.xlu0.b32.cont [9/16] %v50, 128
    %67 = vxpose.xlu0.b32.cont [10/16] %v51, 128
    %68 = vxpose.xlu0.b32.cont [11/16] %v52, 128
    %69 = vxpose.xlu0.b32.cont [12/16] %v53, 128
    %70 = vxpose.xlu0.b32.cont [13/16] %v54, 128
    %71 = vxpose.xlu0.b32.cont [14/16] %v55, 128
    %72 = vxpose.xlu0.b32.cont [15/16] %v56, 128
    %73 = vxpose.xlu0.b32.end [16/16] %v57, 128
    %v74 = vpop.trf.xlu0
    %v75 = vpop.trf.xlu0
    %v76 = vpop.trf.xlu0
    %v77 = vpop.trf.xlu0
    %v78 = vpop.trf.xlu0
    %v79 = vpop.trf.xlu0
    %v80 = vpop.trf.xlu0
    %v81 = vpop.trf.xlu0
    %v82 = vpop.trf.xlu0
    %v83 = vpop.trf.xlu0
    %v84 = vpop.trf.xlu0
    %v85 = vpop.trf.xlu0
    %v86 = vpop.trf.xlu0
    %v87 = vpop.trf.xlu0
    %v88 = vpop.trf.xlu0
    %v89 = vpop.trf.xlu0
    %vm90 = vcmask 1043456
    %v91 = vsel %vm90, %v74, 1.0
    %v92 = vld [vmem:[%s1] sm:$0xff]
    %v93 = vld [vmem:[%s1 + $0x8] sm:$0xff]
    %v94 = vld [vmem:[%s1 + $0x10] sm:$0xff]
    %v95 = vld [vmem:[%s1 + $0x18] sm:$0xff]
    %v96 = vld [vmem:[%s1 + $0x20] sm:$0xff]
    %v97 = vld [vmem:[%s1 + $0x28] sm:$0xff]
    %v98 = vld [vmem:[%s1 + $0x30] sm:$0xff]
    %v99 = vld [vmem:[%s1 + $0x38] sm:$0xff]
    %vm100 = vcmask 39936
    %v102 = vsel %vm100, %v92, 0
    %v105 = vsel %vm100, %v93, 0
    %v108 = vsel %vm100, %v94, 0
    %v111 = vsel %vm100, %v95, 0
    %v114 = vsel %vm100, %v96, 0
    %v117 = vsel %vm100, %v97, 0
    %v120 = vsel %vm100, %v98, 0
    %v123 = vsel %vm100, %v99, 0
    %vm125 = vcmask 1044480
    %v127 = vsel %vm125, %v91, 0
    %129 = vmatprep.subr.mxu0 0.0
    %130 = vmatpush1.msra.mxu0 0.0
    %131 = vmatprep.subr.mxu0 0.0
    %132 = vmatpush1.msra.mxu0 0.0
    %133 = vmatprep.subr.mxu0 0.0
    %134 = vmatpush1.msra.mxu0 0.0
    %135 = vmatprep.subr.mxu0 0.0
    %136 = vmatpush1.msra.mxu0 0.0
    %137 = vmatprep.subr.mxu0 0.0
    %138 = vmatpush1.msra.mxu0 0.0
    %139 = vmatprep.subr.mxu0 0.0
    %140 = vmatpush1.msra.mxu0 0.0
    %141 = vmatprep.subr.mxu0 0.0
    %142 = vmatpush1.msra.mxu0 0.0
    %143 = vmatprep.subr.mxu0 0.0
    %144 = vmatpush1.msra.mxu0 0.0
    %145 = vmatprep.subr.mxu0 0.0
    %146 = vmatpush1.msra.mxu0 0.0
    %147 = vmatprep.subr.mxu0 0.0
    %148 = vmatpush1.msra.mxu0 0.0
    %149 = vmatprep.subr.mxu0 0.0
    %150 = vmatpush1.msra.mxu0 0.0
    %151 = vmatprep.subr.mxu0 0.0
    %152 = vmatpush1.msra.mxu0 0.0
    %153 = vmatprep.subr.mxu0 0.0
    %154 = vmatpush1.msra.mxu0 0.0
    %155 = vmatprep.subr.mxu0 0.0
    %156 = vmatpush1.msra.mxu0 0.0
    %157 = vmatprep.subr.mxu0 0.0
    %158 = vmatpush1.msra.mxu0 0.0
    %159 = vmatprep.subr.mxu0 0.0
    %160 = vmatpush1.msra.mxu0 %v127
    %161 = vmatprep.subr.mxu0 0.0
    %162 = vmatpush2.msra.mxu0 0.0
    %163 = vmatprep.subr.mxu0 0.0
    %164 = vmatpush2.msra.mxu0 0.0
    %165 = vmatprep.subr.mxu0 0.0
    %166 = vmatpush2.msra.mxu0 0.0
    %167 = vmatprep.subr.mxu0 0.0
    %168 = vmatpush2.msra.mxu0 0.0
    %169 = vmatprep.subr.mxu0 0.0
    %170 = vmatpush2.msra.mxu0 0.0
    %171 = vmatprep.subr.mxu0 0.0
    %172 = vmatpush2.msra.mxu0 0.0
    %173 = vmatprep.subr.mxu0 0.0
    %174 = vmatpush2.msra.mxu0 0.0
    %175 = vmatprep.subr.mxu0 0.0
    %176 = vmatpush2.msra.mxu0 0.0
    %177 = vmatprep.subr.mxu0 0.0
    %178 = vmatpush2.msra.mxu0 0.0
    %179 = vmatprep.subr.mxu0 0.0
    %180 = vmatpush2.msra.mxu0 0.0
    %181 = vmatprep.subr.mxu0 0.0
    %182 = vmatpush2.msra.mxu0 0.0
    %183 = vmatprep.subr.mxu0 0.0
    %184 = vmatpush2.msra.mxu0 0.0
    %185 = vmatprep.subr.mxu0 0.0
    %186 = vmatpush2.msra.mxu0 0.0
    %187 = vmatprep.subr.mxu0 0.0
    %188 = vmatpush2.msra.mxu0 0.0
    %189 = vmatprep.subr.mxu0 0.0
    %190 = vmatpush2.msra.mxu0 0.0
    %191 = vmatprep.subr.mxu0 0.0
    %192 = vmatpush2.msra.mxu0 0.0
    %193 = vmatprep.mubr.f32.mxu0 0.0
    %194 = vmatmul.mubr.f32.gmra.mxu0 %v102
    %v195 = vpop.f32.mrf.mxu0
    %v196 = vadd.f32 0.0, %v195
    %v197 = vpop.f32.mrf.mxu0
    %198 = vmatprep.mubr.f32.mxu0 0.0
    %199 = vmatmul.mubr.f32.gmra.mxu0 %v105
    %v200 = vpop.f32.mrf.mxu0
    %v201 = vadd.f32 0.0, %v200
    %v202 = vpop.f32.mrf.mxu0
    %203 = vmatprep.mubr.f32.mxu0 0.0
    %204 = vmatmul.mubr.f32.gmra.mxu0 %v108
    %v205 = vpop.f32.mrf.mxu0
    %v206 = vadd.f32 0.0, %v205
    %v207 = vpop.f32.mrf.mxu0
    %208 = vmatprep.mubr.f32.mxu0 0.0
    %209 = vmatmul.mubr.f32.gmra.mxu0 %v111
    %v210 = vpop.f32.mrf.mxu0
    %v211 = vadd.f32 0.0, %v210
    %v212 = vpop.f32.mrf.mxu0
    %213 = vmatprep.mubr.f32.mxu0 0.0
    %214 = vmatmul.mubr.f32.gmra.mxu0 %v114
    %v215 = vpop.f32.mrf.mxu0
    %v216 = vadd.f32 0.0, %v215
    %v217 = vpop.f32.mrf.mxu0
    %218 = vmatprep.mubr.f32.mxu0 0.0
    %219 = vmatmul.mubr.f32.gmra.mxu0 %v117
    %v220 = vpop.f32.mrf.mxu0
    %v221 = vadd.f32 0.0, %v220
    %v222 = vpop.f32.mrf.mxu0
    %223 = vmatprep.mubr.f32.mxu0 0.0
    %224 = vmatmul.mubr.f32.gmra.mxu0 %v120
    %v225 = vpop.f32.mrf.mxu0
    %v226 = vadd.f32 0.0, %v225
    %v227 = vpop.f32.mrf.mxu0
    %228 = vmatprep.mubr.f32.mxu0 0.0
    %229 = vmatmul.mubr.f32.gmra.mxu0 %v123
    %v230 = vpop.f32.mrf.mxu0
    %v231 = vadd.f32 0.0, %v230
    %v232 = vpop.f32.mrf.mxu0
    %233 = vdwg.mxu0
    %v234 = vtanh.pop %v196
    %v235 = vtanh.pop %v201
    %v236 = vtanh.pop %v206
    %v237 = vtanh.pop %v211
    %v238 = vtanh.pop %v216
    %v239 = vtanh.pop %v221
    %v240 = vtanh.pop %v226
    %v241 = vtanh.pop %v231
    %v242 = vld [vmem:[%s2] sm:$0xff]
    %v243 = vld [vmem:[%s2 + $0x8] sm:$0xff]
    %v244 = vld [vmem:[%s2 + $0x10] sm:$0xff]
    %v245 = vld [vmem:[%s2 + $0x18] sm:$0xff]
    %v246 = vld [vmem:[%s2 + $0x20] sm:$0xff]
    %v247 = vld [vmem:[%s2 + $0x28] sm:$0xff]
    %v248 = vld [vmem:[%s2 + $0x30] sm:$0xff]
    %v249 = vld [vmem:[%s2 + $0x38] sm:$0xff]
    %v250 = vld [vmem:[%s3] sm:$0xff]
    %v251 = vld [vmem:[%s3 + $0x8] sm:$0xff]
    %v252 = vld [vmem:[%s3 + $0x10] sm:$0xff]
    %v253 = vld [vmem:[%s3 + $0x18] sm:$0xff]
    %v254 = vld [vmem:[%s3 + $0x20] sm:$0xff]
    %v255 = vld [vmem:[%s3 + $0x28] sm:$0xff]
    %v256 = vld [vmem:[%s3 + $0x30] sm:$0xff]
    %v257 = vld [vmem:[%s3 + $0x38] sm:$0xff]
    %259 = vset.pattern.permute.xlu0 0
    %260 = vperm.xlu0 %259, %v250
    %v261 = vpop.permute.xlu0 %260
    %264 = vset.pattern.permute.xlu0 0
    %265 = vperm.xlu0 %264, %v251
    %v266 = vpop.permute.xlu0 %265
    %269 = vset.pattern.permute.xlu0 0
    %270 = vperm.xlu0 %269, %v252
    %v271 = vpop.permute.xlu0 %270
    %274 = vset.pattern.permute.xlu0 0
    %275 = vperm.xlu0 %274, %v253
    %v276 = vpop.permute.xlu0 %275
    %279 = vset.pattern.permute.xlu0 0
    %280 = vperm.xlu0 %279, %v254
    %v281 = vpop.permute.xlu0 %280
    %284 = vset.pattern.permute.xlu0 0
    %285 = vperm.xlu0 %284, %v255
    %v286 = vpop.permute.xlu0 %285
    %289 = vset.pattern.permute.xlu0 0
    %290 = vperm.xlu0 %289, %v256
    %v291 = vpop.permute.xlu0 %290
    %294 = vset.pattern.permute.xlu0 0
    %295 = vperm.xlu0 %294, %v257
    %v296 = vpop.permute.xlu0 %295
    %vm298 = vcmask 523264
    %v300 = vsel %vm298, %v242, 0
    %v303 = vsel %vm298, %v243, 0
    %v306 = vsel %vm298, %v244, 0
    %v309 = vsel %vm298, %v245, 0
    %v312 = vsel %vm298, %v246, 0
    %v315 = vsel %vm298, %v247, 0
    %v318 = vsel %vm298, %v248, 0
    %v321 = vsel %vm298, %v249, 0
    %323 = vmatprep.subr.mxu0 0.0
    %324 = vmatpush1.msra.mxu0 0.0
    %325 = vmatprep.subr.mxu0 0.0
    %326 = vmatpush1.msra.mxu0 0.0
    %327 = vmatprep.subr.mxu0 0.0
    %328 = vmatpush1.msra.mxu0 0.0
    %329 = vmatprep.subr.mxu0 0.0
    %330 = vmatpush1.msra.mxu0 0.0
    %331 = vmatprep.subr.mxu0 0.0
    %332 = vmatpush1.msra.mxu0 0.0
    %333 = vmatprep.subr.mxu0 0.0
    %334 = vmatpush1.msra.mxu0 0.0
    %335 = vmatprep.subr.mxu0 0.0
    %336 = vmatpush1.msra.mxu0 0.0
    %337 = vmatprep.subr.mxu0 0.0
    %338 = vmatpush1.msra.mxu0 0.0
    %339 = vmatprep.subr.mxu0 0.0
    %340 = vmatpush1.msra.mxu0 %v241
    %341 = vmatprep.subr.mxu0 0.0
    %342 = vmatpush1.msra.mxu0 %v240
    %343 = vmatprep.subr.mxu0 0.0
    %344 = vmatpush1.msra.mxu0 %v239
    %345 = vmatprep.subr.mxu0 0.0
    %346 = vmatpush1.msra.mxu0 %v238
    %347 = vmatprep.subr.mxu0 0.0
    %348 = vmatpush1.msra.mxu0 %v237
    %349 = vmatprep.subr.mxu0 0.0
    %350 = vmatpush1.msra.mxu0 %v236
    %351 = vmatprep.subr.mxu0 0.0
    %352 = vmatpush1.msra.mxu0 %v235
    %353 = vmatprep.subr.mxu0 0.0
    %354 = vmatpush1.msra.mxu0 %v234
    %355 = vmatprep.subr.mxu0 0.0
    %356 = vmatpush2.msra.mxu0 0.0
    %357 = vmatprep.subr.mxu0 0.0
    %358 = vmatpush2.msra.mxu0 0.0
    %359 = vmatprep.subr.mxu0 0.0
    %360 = vmatpush2.msra.mxu0 0.0
    %361 = vmatprep.subr.mxu0 0.0
    %362 = vmatpush2.msra.mxu0 0.0
    %363 = vmatprep.subr.mxu0 0.0
    %364 = vmatpush2.msra.mxu0 0.0
    %365 = vmatprep.subr.mxu0 0.0
    %366 = vmatpush2.msra.mxu0 0.0
    %367 = vmatprep.subr.mxu0 0.0
    %368 = vmatpush2.msra.mxu0 0.0
    %369 = vmatprep.subr.mxu0 0.0
    %370 = vmatpush2.msra.mxu0 0.0
    %371 = vmatprep.subr.mxu0 0.0
    %372 = vmatpush2.msra.mxu0 0.0
    %373 = vmatprep.subr.mxu0 0.0
    %374 = vmatpush2.msra.mxu0 0.0
    %375 = vmatprep.subr.mxu0 0.0
    %376 = vmatpush2.msra.mxu0 0.0
    %377 = vmatprep.subr.mxu0 0.0
    %378 = vmatpush2.msra.mxu0 0.0
    %379 = vmatprep.subr.mxu0 0.0
    %380 = vmatpush2.msra.mxu0 0.0
    %381 = vmatprep.subr.mxu0 0.0
    %382 = vmatpush2.msra.mxu0 0.0
    %383 = vmatprep.subr.mxu0 0.0
    %384 = vmatpush2.msra.mxu0 0.0
    %385 = vmatprep.subr.mxu0 0.0
    %386 = vmatpush2.msra.mxu0 0.0
    %387 = vmatprep.mubr.f32.mxu0 0.0
    %388 = vmatmul.mubr.f32.gmra.mxu0 %v300
    %v389 = vpop.f32.mrf.mxu0
    %v390 = vadd.f32 %v261, %v389
    %v391 = vpop.f32.mrf.mxu0
    %392 = vmatprep.mubr.f32.mxu0 0.0
    %393 = vmatmul.mubr.f32.gmra.mxu0 %v303
    %v394 = vpop.f32.mrf.mxu0
    %v395 = vadd.f32 %v266, %v394
    %v396 = vpop.f32.mrf.mxu0
    %397 = vmatprep.mubr.f32.mxu0 0.0
    %398 = vmatmul.mubr.f32.gmra.mxu0 %v306
    %v399 = vpop.f32.mrf.mxu0
    %v400 = vadd.f32 %v271, %v399
    %v401 = vpop.f32.mrf.mxu0
    %402 = vmatprep.mubr.f32.mxu0 0.0
    %403 = vmatmul.mubr.f32.gmra.mxu0 %v309
    %v404 = vpop.f32.mrf.mxu0
    %v405 = vadd.f32 %v276, %v404
    %v406 = vpop.f32.mrf.mxu0
    %407 = vmatprep.mubr.f32.mxu0 0.0
    %408 = vmatmul.mubr.f32.gmra.mxu0 %v312
    %v409 = vpop.f32.mrf.mxu0
    %v410 = vadd.f32 %v281, %v409
    %v411 = vpop.f32.mrf.mxu0
    %412 = vmatprep.mubr.f32.mxu0 0.0
    %413 = vmatmul.mubr.f32.gmra.mxu0 %v315
    %v414 = vpop.f32.mrf.mxu0
    %v415 = vadd.f32 %v286, %v414
    %v416 = vpop.f32.mrf.mxu0
    %417 = vmatprep.mubr.f32.mxu0 0.0
    %418 = vmatmul.mubr.f32.gmra.mxu0 %v318
    %v419 = vpop.f32.mrf.mxu0
    %v420 = vadd.f32 %v291, %v419
    %v421 = vpop.f32.mrf.mxu0
    %422 = vmatprep.mubr.f32.mxu0 0.0
    %423 = vmatmul.mubr.f32.gmra.mxu0 %v321
    %v424 = vpop.f32.mrf.mxu0
    %v425 = vadd.f32 %v296, %v424
    %v426 = vpop.f32.mrf.mxu0
    %427 = vdwg.mxu0
    %v428 = vtanh.pop %v390
    %v429 = vtanh.pop %v395
    %v430 = vtanh.pop %v400
    %v431 = vtanh.pop %v405
    %v432 = vtanh.pop %v410
    %v433 = vtanh.pop %v415
    %v434 = vtanh.pop %v420
    %v435 = vtanh.pop %v425
    %v436 = vld [vmem:[%s4] sm:$0xff]
    %v437 = vld [vmem:[%s5] sm:$0xff]
    %439 = vset.pattern.permute.xlu0 0
    %440 = vperm.xlu0 %439, %v437
    %v441 = vpop.permute.xlu0 %440
    %v444 = vsel %vm298, %v436, 0
    %446 = vmatprep.subr.mxu0 0.0
    %447 = vmatpush1.msra.mxu0 0.0
    %448 = vmatprep.subr.mxu0 0.0
    %449 = vmatpush1.msra.mxu0 0.0
    %450 = vmatprep.subr.mxu0 0.0
    %451 = vmatpush1.msra.mxu0 0.0
    %452 = vmatprep.subr.mxu0 0.0
    %453 = vmatpush1.msra.mxu0 0.0
    %454 = vmatprep.subr.mxu0 0.0
    %455 = vmatpush1.msra.mxu0 0.0
    %456 = vmatprep.subr.mxu0 0.0
    %457 = vmatpush1.msra.mxu0 0.0
    %458 = vmatprep.subr.mxu0 0.0
    %459 = vmatpush1.msra.mxu0 0.0
    %460 = vmatprep.subr.mxu0 0.0
    %461 = vmatpush1.msra.mxu0 0.0
    %462 = vmatprep.subr.mxu0 0.0
    %463 = vmatpush1.msra.mxu0 %v435
    %464 = vmatprep.subr.mxu0 0.0
    %465 = vmatpush1.msra.mxu0 %v434
    %466 = vmatprep.subr.mxu0 0.0
    %467 = vmatpush1.msra.mxu0 %v433
    %468 = vmatprep.subr.mxu0 0.0
    %469 = vmatpush1.msra.mxu0 %v432
    %470 = vmatprep.subr.mxu0 0.0
    %471 = vmatpush1.msra.mxu0 %v431
    %472 = vmatprep.subr.mxu0 0.0
    %473 = vmatpush1.msra.mxu0 %v430
    %474 = vmatprep.subr.mxu0 0.0
    %475 = vmatpush1.msra.mxu0 %v429
    %476 = vmatprep.subr.mxu0 0.0
    %477 = vmatpush1.msra.mxu0 %v428
    %478 = vmatprep.subr.mxu0 0.0
    %479 = vmatpush2.msra.mxu0 0.0
    %480 = vmatprep.subr.mxu0 0.0
    %481 = vmatpush2.msra.mxu0 0.0
    %482 = vmatprep.subr.mxu0 0.0
    %483 = vmatpush2.msra.mxu0 0.0
    %484 = vmatprep.subr.mxu0 0.0
    %485 = vmatpush2.msra.mxu0 0.0
    %486 = vmatprep.subr.mxu0 0.0
    %487 = vmatpush2.msra.mxu0 0.0
    %488 = vmatprep.subr.mxu0 0.0
    %489 = vmatpush2.msra.mxu0 0.0
    %490 = vmatprep.subr.mxu0 0.0
    %491 = vmatpush2.msra.mxu0 0.0
    %492 = vmatprep.subr.mxu0 0.0
    %493 = vmatpush2.msra.mxu0 0.0
    %494 = vmatprep.subr.mxu0 0.0
    %495 = vmatpush2.msra.mxu0 0.0
    %496 = vmatprep.subr.mxu0 0.0
    %497 = vmatpush2.msra.mxu0 0.0
    %498 = vmatprep.subr.mxu0 0.0
    %499 = vmatpush2.msra.mxu0 0.0
    %500 = vmatprep.subr.mxu0 0.0
    %501 = vmatpush2.msra.mxu0 0.0
    %502 = vmatprep.subr.mxu0 0.0
    %503 = vmatpush2.msra.mxu0 0.0
    %504 = vmatprep.subr.mxu0 0.0
    %505 = vmatpush2.msra.mxu0 0.0
    %506 = vmatprep.subr.mxu0 0.0
    %507 = vmatpush2.msra.mxu0 0.0
    %508 = vmatprep.subr.mxu0 0.0
    %509 = vmatpush2.msra.mxu0 0.0
    %510 = vmatprep.mubr.f32.mxu0 0.0
    %511 = vmatmul.mubr.f32.gmra.mxu0 %v444
    %v512 = vpop.f32.mrf.mxu0
    %v513 = vadd.f32 %v441, %v512
    %v514 = vpop.f32.mrf.mxu0
    %515 = vdwg.mxu0
    %v516 = vmul.f32 %v513, 1.442695
    %v517 = vpow.pop %v516
    %v518 = vmul.f32 %v74, %v517
    %v520 = vrot.slane %v518, 4
    %v522 = vadd.f32 %v513, %v520
    %v523 = vsel %vm90, %v522, 1.0
    %v524 = vld [vmem:[%s6] sm:$0xff]
    %v525 = vld [vmem:[%s6 + $0x8] sm:$0xff]
    %v526 = vld [vmem:[%s6 + $0x10] sm:$0xff]
    %v527 = vld [vmem:[%s6 + $0x18] sm:$0xff]
    %v528 = vld [vmem:[%s6 + $0x20] sm:$0xff]
    %v529 = vld [vmem:[%s6 + $0x28] sm:$0xff]
    %v530 = vld [vmem:[%s6 + $0x30] sm:$0xff]
    %v531 = vld [vmem:[%s6 + $0x38] sm:$0xff]
    %v533 = vsel %vm100, %v524, 0
    %v536 = vsel %vm100, %v525, 0
    %v539 = vsel %vm100, %v526, 0
    %v542 = vsel %vm100, %v527, 0
    %v545 = vsel %vm100, %v528, 0
    %v548 = vsel %vm100, %v529, 0
    %v551 = vsel %vm100, %v530, 0
    %v554 = vsel %vm100, %v531, 0
    %v557 = vsel %vm125, %v523, 0
    %559 = vmatprep.subr.mxu0 0.0
    %560 = vmatpush1.msra.mxu0 0.0
    %561 = vmatprep.subr.mxu0 0.0
    %562 = vmatpush1.msra.mxu0 0.0
    %563 = vmatprep.subr.mxu0 0.0
    %564 = vmatpush1.msra.mxu0 0.0
    %565 = vmatprep.subr.mxu0 0.0
    %566 = vmatpush1.msra.mxu0 0.0
    %567 = vmatprep.subr.mxu0 0.0
    %568 = vmatpush1.msra.mxu0 0.0
    %569 = vmatprep.subr.mxu0 0.0
    %570 = vmatpush1.msra.mxu0 0.0
    %571 = vmatprep.subr.mxu0 0.0
    %572 = vmatpush1.msra.mxu0 0.0
    %573 = vmatprep.subr.mxu0 0.0
    %574 = vmatpush1.msra.mxu0 0.0
    %575 = vmatprep.subr.mxu0 0.0
    %576 = vmatpush1.msra.mxu0 0.0
    %577 = vmatprep.subr.mxu0 0.0
    %578 = vmatpush1.msra.mxu0 0.0
    %579 = vmatprep.subr.mxu0 0.0
    %580 = vmatpush1.msra.mxu0 0.0
    %581 = vmatprep.subr.mxu0 0.0
    %582 = vmatpush1.msra.mxu0 0.0
    %583 = vmatprep.subr.mxu0 0.0
    %584 = vmatpush1.msra.mxu0 0.0
    %585 = vmatprep.subr.mxu0 0.0
    %586 = vmatpush1.msra.mxu0 0.0
    %587 = vmatprep.subr.mxu0 0.0
    %588 = vmatpush1.msra.mxu0 0.0
    %589 = vmatprep.subr.mxu0 0.0
    %590 = vmatpush1.msra.mxu0 %v557
    %591 = vmatprep.subr.mxu0 0.0
    %592 = vmatpush2.msra.mxu0 0.0
    %593 = vmatprep.subr.mxu0 0.0
    %594 = vmatpush2.msra.mxu0 0.0
    %595 = vmatprep.subr.mxu0 0.0
    %596 = vmatpush2.msra.mxu0 0.0
    %597 = vmatprep.subr.mxu0 0.0
    %598 = vmatpush2.msra.mxu0 0.0
    %599 = vmatprep.subr.mxu0 0.0
    %600 = vmatpush2.msra.mxu0 0.0
    %601 = vmatprep.subr.mxu0 0.0
    %602 = vmatpush2.msra.mxu0 0.0
    %603 = vmatprep.subr.mxu0 0.0
    %604 = vmatpush2.msra.mxu0 0.0
    %605 = vmatprep.subr.mxu0 0.0
    %606 = vmatpush2.msra.mxu0 0.0
    %607 = vmatprep.subr.mxu0 0.0
    %608 = vmatpush2.msra.mxu0 0.0
    %609 = vmatprep.subr.mxu0 0.0
    %610 = vmatpush2.msra.mxu0 0.0
    %611 = vmatprep.subr.mxu0 0.0
    %612 = vmatpush2.msra.mxu0 0.0
    %613 = vmatprep.subr.mxu0 0.0
    %614 = vmatpush2.msra.mxu0 0.0
    %615 = vmatprep.subr.mxu0 0.0
    %616 = vmatpush2.msra.mxu0 0.0
    %617 = vmatprep.subr.mxu0 0.0
    %618 = vmatpush2.msra.mxu0 0.0
    %619 = vmatprep.subr.mxu0 0.0
    %620 = vmatpush2.msra.mxu0 0.0
    %621 = vmatprep.subr.mxu0 0.0
    %622 = vmatpush2.msra.mxu0 0.0
    %623 = vmatprep.mubr.f32.mxu0 0.0
    %624 = vmatmul.mubr.f32.gmra.mxu0 %v533
    %v625 = vpop.f32.mrf.mxu0
    %v626 = vadd.f32 0.0, %v625
    %v627 = vpop.f32.mrf.mxu0
    %628 = vmatprep.mubr.f32.mxu0 0.0
    %629 = vmatmul.mubr.f32.gmra.mxu0 %v536
    %v630 = vpop.f32.mrf.mxu0
    %v631 = vadd.f32 0.0, %v630
    %v632 = vpop.f32.mrf.mxu0
    %633 = vmatprep.mubr.f32.mxu0 0.0
    %634 = vmatmul.mubr.f32.gmra.mxu0 %v539
    %v635 = vpop.f32.mrf.mxu0
    %v636 = vadd.f32 0.0, %v635
    %v637 = vpop.f32.mrf.mxu0
    %638 = vmatprep.mubr.f32.mxu0 0.0
    %639 = vmatmul.mubr.f32.gmra.mxu0 %v542
    %v640 = vpop.f32.mrf.mxu0
    %v641 = vadd.f32 0.0, %v640
    %v642 = vpop.f32.mrf.mxu0
    %643 = vmatprep.mubr.f32.mxu0 0.0
    %644 = vmatmul.mubr.f32.gmra.mxu0 %v545
    %v645 = vpop.f32.mrf.mxu0
    %v646 = vadd.f32 0.0, %v645
    %v647 = vpop.f32.mrf.mxu0
    %648 = vmatprep.mubr.f32.mxu0 0.0
    %649 = vmatmul.mubr.f32.gmra.mxu0 %v548
    %v650 = vpop.f32.mrf.mxu0
    %v651 = vadd.f32 0.0, %v650
    %v652 = vpop.f32.mrf.mxu0
    %653 = vmatprep.mubr.f32.mxu0 0.0
    %654 = vmatmul.mubr.f32.gmra.mxu0 %v551
    %v655 = vpop.f32.mrf.mxu0
    %v656 = vadd.f32 0.0, %v655
    %v657 = vpop.f32.mrf.mxu0
    %658 = vmatprep.mubr.f32.mxu0 0.0
    %659 = vmatmul.mubr.f32.gmra.mxu0 %v554
    %v660 = vpop.f32.mrf.mxu0
    %v661 = vadd.f32 0.0, %v660
    %v662 = vpop.f32.mrf.mxu0
    %663 = vdwg.mxu0
    %v664 = vtanh.pop %v626
    %v665 = vtanh.pop %v631
    %v666 = vtanh.pop %v636
    %v667 = vtanh.pop %v641
    %v668 = vtanh.pop %v646
    %v669 = vtanh.pop %v651
    %v670 = vtanh.pop %v656
    %v671 = vtanh.pop %v661
    %v672 = vld [vmem:[%s7] sm:$0xff]
    %v673 = vld [vmem:[%s7 + $0x8] sm:$0xff]
    %v674 = vld [vmem:[%s7 + $0x10] sm:$0xff]
    %v675 = vld [vmem:[%s7 + $0x18] sm:$0xff]
    %v676 = vld [vmem:[%s7 + $0x20] sm:$0xff]
    %v677 = vld [vmem:[%s7 + $0x28] sm:$0xff]
    %v678 = vld [vmem:[%s7 + $0x30] sm:$0xff]
    %v679 = vld [vmem:[%s7 + $0x38] sm:$0xff]
    %v680 = vld [vmem:[%s8] sm:$0xff]
    %v681 = vld [vmem:[%s8 + $0x8] sm:$0xff]
    %v682 = vld [vmem:[%s8 + $0x10] sm:$0xff]
    %v683 = vld [vmem:[%s8 + $0x18] sm:$0xff]
    %v684 = vld [vmem:[%s8 + $0x20] sm:$0xff]
    %v685 = vld [vmem:[%s8 + $0x28] sm:$0xff]
    %v686 = vld [vmem:[%s8 + $0x30] sm:$0xff]
    %v687 = vld [vmem:[%s8 + $0x38] sm:$0xff]
    %689 = vset.pattern.permute.xlu0 0
    %690 = vperm.xlu0 %689, %v680
    %v691 = vpop.permute.xlu0 %690
    %694 = vset.pattern.permute.xlu0 0
    %695 = vperm.xlu0 %694, %v681
    %v696 = vpop.permute.xlu0 %695
    %699 = vset.pattern.permute.xlu0 0
    %700 = vperm.xlu0 %699, %v682
    %v701 = vpop.permute.xlu0 %700
    %704 = vset.pattern.permute.xlu0 0
    %705 = vperm.xlu0 %704, %v683
    %v706 = vpop.permute.xlu0 %705
    %709 = vset.pattern.permute.xlu0 0
    %710 = vperm.xlu0 %709, %v684
    %v711 = vpop.permute.xlu0 %710
    %714 = vset.pattern.permute.xlu0 0
    %715 = vperm.xlu0 %714, %v685
    %v716 = vpop.permute.xlu0 %715
    %719 = vset.pattern.permute.xlu0 0
    %720 = vperm.xlu0 %719, %v686
    %v721 = vpop.permute.xlu0 %720
    %724 = vset.pattern.permute.xlu0 0
    %725 = vperm.xlu0 %724, %v687
    %v726 = vpop.permute.xlu0 %725
    %v729 = vsel %vm298, %v672, 0
    %v732 = vsel %vm298, %v673, 0
    %v735 = vsel %vm298, %v674, 0
    %v738 = vsel %vm298, %v675, 0
    %v741 = vsel %vm298, %v676, 0
    %v744 = vsel %vm298, %v677, 0
    %v747 = vsel %vm298, %v678, 0
    %v750 = vsel %vm298, %v679, 0
    %752 = vmatprep.subr.mxu0 0.0
    %753 = vmatpush1.msra.mxu0 0.0
    %754 = vmatprep.subr.mxu0 0.0
    %755 = vmatpush1.msra.mxu0 0.0
    %756 = vmatprep.subr.mxu0 0.0
    %757 = vmatpush1.msra.mxu0 0.0
    %758 = vmatprep.subr.mxu0 0.0
    %759 = vmatpush1.msra.mxu0 0.0
    %760 = vmatprep.subr.mxu0 0.0
    %761 = vmatpush1.msra.mxu0 0.0
    %762 = vmatprep.subr.mxu0 0.0
    %763 = vmatpush1.msra.mxu0 0.0
    %764 = vmatprep.subr.mxu0 0.0
    %765 = vmatpush1.msra.mxu0 0.0
    %766 = vmatprep.subr.mxu0 0.0
    %767 = vmatpush1.msra.mxu0 0.0
    %768 = vmatprep.subr.mxu0 0.0
    %769 = vmatpush1.msra.mxu0 %v671
    %770 = vmatprep.subr.mxu0 0.0
    %771 = vmatpush1.msra.mxu0 %v670
    %772 = vmatprep.subr.mxu0 0.0
    %773 = vmatpush1.msra.mxu0 %v669
    %774 = vmatprep.subr.mxu0 0.0
    %775 = vmatpush1.msra.mxu0 %v668
    %776 = vmatprep.subr.mxu0 0.0
    %777 = vmatpush1.msra.mxu0 %v667
    %778 = vmatprep.subr.mxu0 0.0
    %779 = vmatpush1.msra.mxu0 %v666
    %780 = vmatprep.subr.mxu0 0.0
    %781 = vmatpush1.msra.mxu0 %v665
    %782 = vmatprep.subr.mxu0 0.0
    %783 = vmatpush1.msra.mxu0 %v664
    %784 = vmatprep.subr.mxu0 0.0
    %785 = vmatpush2.msra.mxu0 0.0
    %786 = vmatprep.subr.mxu0 0.0
    %787 = vmatpush2.msra.mxu0 0.0
    %788 = vmatprep.subr.mxu0 0.0
    %789 = vmatpush2.msra.mxu0 0.0
    %790 = vmatprep.subr.mxu0 0.0
    %791 = vmatpush2.msra.mxu0 0.0
    %792 = vmatprep.subr.mxu0 0.0
    %793 = vmatpush2.msra.mxu0 0.0
    %794 = vmatprep.subr.mxu0 0.0
    %795 = vmatpush2.msra.mxu0 0.0
    %796 = vmatprep.subr.mxu0 0.0
    %797 = vmatpush2.msra.mxu0 0.0
    %798 = vmatprep.subr.mxu0 0.0
    %799 = vmatpush2.msra.mxu0 0.0
    %800 = vmatprep.subr.mxu0 0.0
    %801 = vmatpush2.msra.mxu0 0.0
    %802 = vmatprep.subr.mxu0 0.0
    %803 = vmatpush2.msra.mxu0 0.0
    %804 = vmatprep.subr.mxu0 0.0
    %805 = vmatpush2.msra.mxu0 0.0
    %806 = vmatprep.subr.mxu0 0.0
    %807 = vmatpush2.msra.mxu0 0.0
    %808 = vmatprep.subr.mxu0 0.0
    %809 = vmatpush2.msra.mxu0 0.0
    %810 = vmatprep.subr.mxu0 0.0
    %811 = vmatpush2.msra.mxu0 0.0
    %812 = vmatprep.subr.mxu0 0.0
    %813 = vmatpush2.msra.mxu0 0.0
    %814 = vmatprep.subr.mxu0 0.0
    %815 = vmatpush2.msra.mxu0 0.0
    %816 = vmatprep.mubr.f32.mxu0 0.0
    %817 = vmatmul.mubr.f32.gmra.mxu0 %v729
    %v818 = vpop.f32.mrf.mxu0
    %v819 = vadd.f32 %v691, %v818
    %v820 = vpop.f32.mrf.mxu0
    %821 = vmatprep.mubr.f32.mxu0 0.0
    %822 = vmatmul.mubr.f32.gmra.mxu0 %v732
    %v823 = vpop.f32.mrf.mxu0
    %v824 = vadd.f32 %v696, %v823
    %v825 = vpop.f32.mrf.mxu0
    %826 = vmatprep.mubr.f32.mxu0 0.0
    %827 = vmatmul.mubr.f32.gmra.mxu0 %v735
    %v828 = vpop.f32.mrf.mxu0
    %v829 = vadd.f32 %v701, %v828
    %v830 = vpop.f32.mrf.mxu0
    %831 = vmatprep.mubr.f32.mxu0 0.0
    %832 = vmatmul.mubr.f32.gmra.mxu0 %v738
    %v833 = vpop.f32.mrf.mxu0
    %v834 = vadd.f32 %v706, %v833
    %v835 = vpop.f32.mrf.mxu0
    %836 = vmatprep.mubr.f32.mxu0 0.0
    %837 = vmatmul.mubr.f32.gmra.mxu0 %v741
    %v838 = vpop.f32.mrf.mxu0
    %v839 = vadd.f32 %v711, %v838
    %v840 = vpop.f32.mrf.mxu0
    %841 = vmatprep.mubr.f32.mxu0 0.0
    %842 = vmatmul.mubr.f32.gmra.mxu0 %v744
    %v843 = vpop.f32.mrf.mxu0
    %v844 = vadd.f32 %v716, %v843
    %v845 = vpop.f32.mrf.mxu0
    %846 = vmatprep.mubr.f32.mxu0 0.0
    %847 = vmatmul.mubr.f32.gmra.mxu0 %v747
    %v848 = vpop.f32.mrf.mxu0
    %v849 = vadd.f32 %v721, %v848
    %v850 = vpop.f32.mrf.mxu0
    %851 = vmatprep.mubr.f32.mxu0 0.0
    %852 = vmatmul.mubr.f32.gmra.mxu0 %v750
    %v853 = vpop.f32.mrf.mxu0
    %v854 = vadd.f32 %v726, %v853
    %v855 = vpop.f32.mrf.mxu0
    %856 = vdwg.mxu0
    %v857 = vtanh.pop %v819
    %v858 = vtanh.pop %v824
    %v859 = vtanh.pop %v829
    %v860 = vtanh.pop %v834
    %v861 = vtanh.pop %v839
    %v862 = vtanh.pop %v844
    %v863 = vtanh.pop %v849
    %v864 = vtanh.pop %v854
    %v865 = vld [vmem:[%s9] sm:$0xff]
    %v866 = vld [vmem:[%s10] sm:$0xff]
    %868 = vset.pattern.permute.xlu0 0
    %869 = vperm.xlu0 %868, %v866
    %v870 = vpop.permute.xlu0 %869
    %v873 = vsel %vm298, %v865, 0
    %875 = vmatprep.subr.mxu0 0.0
    %876 = vmatpush1.msra.mxu0 0.0
    %877 = vmatprep.subr.mxu0 0.0
    %878 = vmatpush1.msra.mxu0 0.0
    %879 = vmatprep.subr.mxu0 0.0
    %880 = vmatpush1.msra.mxu0 0.0
    %881 = vmatprep.subr.mxu0 0.0
    %882 = vmatpush1.msra.mxu0 0.0
    %883 = vmatprep.subr.mxu0 0.0
    %884 = vmatpush1.msra.mxu0 0.0
    %885 = vmatprep.subr.mxu0 0.0
    %886 = vmatpush1.msra.mxu0 0.0
    %887 = vmatprep.subr.mxu0 0.0
    %888 = vmatpush1.msra.mxu0 0.0
    %889 = vmatprep.subr.mxu0 0.0
    %890 = vmatpush1.msra.mxu0 0.0
    %891 = vmatprep.subr.mxu0 0.0
    %892 = vmatpush1.msra.mxu0 %v864
    %893 = vmatprep.subr.mxu0 0.0
    %894 = vmatpush1.msra.mxu0 %v863
    %895 = vmatprep.subr.mxu0 0.0
    %896 = vmatpush1.msra.mxu0 %v862
    %897 = vmatprep.subr.mxu0 0.0
    %898 = vmatpush1.msra.mxu0 %v861
    %899 = vmatprep.subr.mxu0 0.0
    %900 = vmatpush1.msra.mxu0 %v860
    %901 = vmatprep.subr.mxu0 0.0
    %902 = vmatpush1.msra.mxu0 %v859
    %903 = vmatprep.subr.mxu0 0.0
    %904 = vmatpush1.msra.mxu0 %v858
    %905 = vmatprep.subr.mxu0 0.0
    %906 = vmatpush1.msra.mxu0 %v857
    %907 = vmatprep.subr.mxu0 0.0
    %908 = vmatpush2.msra.mxu0 0.0
    %909 = vmatprep.subr.mxu0 0.0
    %910 = vmatpush2.msra.mxu0 0.0
    %911 = vmatprep.subr.mxu0 0.0
    %912 = vmatpush2.msra.mxu0 0.0
    %913 = vmatprep.subr.mxu0 0.0
    %914 = vmatpush2.msra.mxu0 0.0
    %915 = vmatprep.subr.mxu0 0.0
    %916 = vmatpush2.msra.mxu0 0.0
    %917 = vmatprep.subr.mxu0 0.0
    %918 = vmatpush2.msra.mxu0 0.0
    %919 = vmatprep.subr.mxu0 0.0
    %920 = vmatpush2.msra.mxu0 0.0
    %921 = vmatprep.subr.mxu0 0.0
    %922 = vmatpush2.msra.mxu0 0.0
    %923 = vmatprep.subr.mxu0 0.0
    %924 = vmatpush2.msra.mxu0 0.0
    %925 = vmatprep.subr.mxu0 0.0
    %926 = vmatpush2.msra.mxu0 0.0
    %927 = vmatprep.subr.mxu0 0.0
    %928 = vmatpush2.msra.mxu0 0.0
    %929 = vmatprep.subr.mxu0 0.0
    %930 = vmatpush2.msra.mxu0 0.0
    %931 = vmatprep.subr.mxu0 0.0
    %932 = vmatpush2.msra.mxu0 0.0
    %933 = vmatprep.subr.mxu0 0.0
    %934 = vmatpush2.msra.mxu0 0.0
    %935 = vmatprep.subr.mxu0 0.0
    %936 = vmatpush2.msra.mxu0 0.0
    %937 = vmatprep.subr.mxu0 0.0
    %938 = vmatpush2.msra.mxu0 0.0
    %939 = vmatprep.mubr.f32.mxu0 0.0
    %940 = vmatmul.mubr.f32.gmra.mxu0 %v873
    %v941 = vpop.f32.mrf.mxu0
    %v942 = vadd.f32 %v870, %v941
    %v943 = vpop.f32.mrf.mxu0
    %944 = vdwg.mxu0
    %v945 = vmul.f32 %v942, 1.442695
    %v946 = vpow.pop %v945
    %v948 = vrot.slane %v946, 4
    %v950 = vmul.f32 %v74, %v948
    %v951 = vadd.f32 %v942, %v950
    %v953 = vrot.slane %v522, 4
    %v955 = vsel %vm90, %v951, %v953
    %956 = vst [vmem:[#allocation2] sm:$0xff] %v955
    %v958 = vrot.slane %v513, 4
    %v960 = vsel %vm90, %v958, 0.0
    %v961 = vrot.slane %v960, 4
    %v962 = vadd.f32 %v960, %v961
    %v963 = vrot.slane %v962, 2
    %v964 = vadd.f32 %v962, %v963
    %v965 = vrot.slane %v964, 1
    %v966 = vadd.f32 %v964, %v965
    %v968 = vrot.slane %v942, 4
    %v970 = vsel %vm90, %v968, 0.0
    %v971 = vrot.slane %v970, 4
    %v972 = vadd.f32 %v970, %v971
    %v973 = vrot.slane %v972, 2
    %v974 = vadd.f32 %v972, %v973
    %v975 = vrot.slane %v974, 1
    %v976 = vadd.f32 %v974, %v975
    %v977 = vadd.f32 %v966, %v976
    %978 = vst [vmem:[#allocation4] sm:$0x1] %v977
    // Predicated region
    $region46: #{tpu_custom_call.1} parent=1 // pred_check
      _
    $region47: #{tpu_custom_call.1} parent=1 // pred_check_branch
      %980 = sbr.rel (0) target = $region49
    $region48: #{tpu_custom_call.1} parent=1 // pred_region
      %s982 = ssub.s32 128, 128
      %983 = vsyncadd [#allocation3], %s982
      %s985 = sshll.u32 [#allocation2], 4
      %s986 = int_to_ptr.vmem [resolvable:$true] %s985
      %988 = dma.vmem_to_hbm [thread:$0]  %s986, 128, %s11, [#allocation3]
    $region49: #{tpu_custom_call.1} parent=1 // pred_fallthru
      _
    // Predicated region
    $region50: #{tpu_custom_call.1} parent=1 // pred_check
      _
    $region51: #{tpu_custom_call.1} parent=1 // pred_check_branch
      %990 = sbr.rel (0) target = $region53
    $region52: #{tpu_custom_call.1} parent=1 // pred_region
      %s992 = ssub.s32 16, 16
      %993 = vsyncadd [#allocation5], %s992
      %s995 = sshll.u32 [#allocation4], 4
      %s996 = int_to_ptr.vmem [resolvable:$true] %s995
      %998 = dma.vmem_to_hbm [thread:$0]  %s996, 16, %s12, [#allocation5]
    $region53: #{tpu_custom_call.1} parent=1 // pred_fallthru
      _
    // Predicated region
    $region54: #{tpu_custom_call.1} parent=1 // pred_check
      _
    $region55: #{tpu_custom_call.1} parent=1 // pred_check_branch
      %1000 = sbr.rel (0) target = $region57
    $region56: #{tpu_custom_call.1} parent=1 // pred_region
      %1001 = dma.done [#allocation3], 128
    $region57: #{tpu_custom_call.1} parent=1 // pred_fallthru
      _
    // Predicated region
    $region58: #{tpu_custom_call.1} parent=1 // pred_check
      _
    $region59: #{tpu_custom_call.1} parent=1 // pred_check_branch
      %1003 = sbr.rel (0) target = $region61
    $region60: #{tpu_custom_call.1} parent=1 // pred_region
      %1004 = dma.done [#allocation5], 16
    $region61: #{tpu_custom_call.1} parent=1 // pred_fallthru
      _
    %1005 = vsyncpa [#allocation3], 1
    %1006 = vsyncpa [#allocation5], 1

</llo_original>
